<compile_context>
chip_gen: v6e
topology: v6e:2x2x1
jax: 0.10.0
libtpu: 0.0.40
codegen_flags: <defaults>
</compile_context>

<pallas_src>
import functools

import jax
import jax.numpy as jnp
from jax.experimental import pallas as pl
from jax.experimental.pallas import tpu as pltpu

ZD = 16
XD = 256
H1 = ZD * 8      # 128
H2 = XD // 8     # 32
H3 = XD // 16    # 16
NEG_SLOPE = 0.02


def _round_up(n, m):
    return ((n + m - 1) // m) * m


def _cdiv(a, b):
    return (a + b - 1) // b


def _leaky_relu(x, slope=NEG_SLOPE):
    return jnp.where(x > 0, x, slope * x)


def _choose_tile(batch, tb_max):
    """Batch tile: multiple of 8, capped at tb_max, >=2 grid steps when batch allows."""
    tb = min(tb_max, _round_up(batch, 8))
    if batch > 8 and _cdiv(batch, tb) < 2:
        tb = max(8, _round_up(_cdiv(batch, 2), 8))
    return tb


def _disc_kernel(x_ref, w12_ref, w3_ref, w4_ref, b4_ref, o_ref):
    # x_ref:   (TB, 256) caller dtype (f32/bf16) -- streamed batch tile, cast to bf16 here
    # w12_ref: (256, 32) bf16  -- W1 @ W2 folded, (in, out) layout, VMEM-resident
    # w3_ref:  (32, 16)  bf16  -- (in, out) layout, VMEM-resident
    # w4_ref:  (8, 16)   bf16  -- spectral-normalized last-layer row in row 0, rows 1..7 zero
    # b4_ref:  (1, 1)    f32   -- SMEM scalar bias
    # o_ref:   (1, TB)   f32   -- lane-dense output row
    xb = x_ref[...].astype(jnp.bfloat16)                         # cast hidden behind x DMA
    h = jnp.dot(xb, w12_ref[...],
                preferred_element_type=jnp.float32)              # (TB, 32), MXU bf16, f32 acc
    h = _leaky_relu(h)
    h = jnp.dot(h.astype(jnp.bfloat16), w3_ref[...],
                preferred_element_type=jnp.float32)              # (TB, 16)
    h = _leaky_relu(h)
    # Final 16 -> 1 layer as w4 @ h^T (q@k^T-style contraction): produces the batch along
    # lanes directly, so the output block is lane-dense and stored with unmasked vst.
    s = jax.lax.dot_general(
        w4_ref[...], h.astype(jnp.bfloat16),
        dimension_numbers=(((1,), (1,)), ((), ())),
        preferred_element_type=jnp.float32)                      # (8, TB); only row 0 is real
    o_ref[...] = s[0:1, :] + b4_ref[0, 0]


def _spectral_normalize(w4_raw, u0, eps=1e-12):
    """torch.nn.utils.spectral_norm forward math (1 power iteration).

    w4_raw: (1, 16) un-normalized weight in PyTorch (out, in) layout; u0: (1,) buffer.
    Returns (W / sigma, updated u)."""
    v = w4_raw.T @ u0
    v = v / jnp.maximum(jnp.linalg.norm(v), eps)
    u = w4_raw @ v
    u = u / jnp.maximum(jnp.linalg.norm(u), eps)
    sigma = u @ (w4_raw @ v)
    return w4_raw / sigma, u


@functools.partial(jax.jit, static_argnames=("tb",))
def discriminator_x(x, w1, w2, w3, w4_raw, b4, u0, *, tb=8192):
    """x: (B, 256).  w1/w2/w3 in (in, out) layout; w4_raw is the un-normalized last-layer
    weight in PyTorch (1, 16) layout; b4: (1,); u0: (1,) power-iteration buffer."""
    B = x.shape[0]
    assert x.shape[1] == XD

    # Fold the two leading bias-free, activation-free linears into one (256, 32) weight.
    w12 = (w1 @ w2).astype(jnp.bfloat16)
    w3_b = w3.astype(jnp.bfloat16)

    # Spectral norm of the last layer (tiny (1,16) power iteration, plain-JAX glue).
    w4_sn, _u_new = _spectral_normalize(w4_raw, u0)
    # TODO(synk): torch's spectral_norm also updates the `u` buffer in place on every
    # training-mode forward; callers needing that statefulness must thread `_u_new` back.
    w4_pad = jnp.zeros((8, H3), jnp.bfloat16).at[0, :].set(
        w4_sn.reshape(H3).astype(jnp.bfloat16))                  # pad to 8 sublanes for MXU
    b4_smem = b4.reshape(1, 1).astype(jnp.float32)

    # Batch tiling: TB rows per grid step; ragged final tile handled by Pallas (no jnp.pad).
    tb_eff = _choose_tile(B, tb)
    num_tiles = _cdiv(B, tb_eff)

    out = pl.pallas_call(
        _disc_kernel,
        out_shape=jax.ShapeDtypeStruct((num_tiles, tb_eff), jnp.float32),
        grid=(num_tiles,),
        in_specs=[
            pl.BlockSpec((tb_eff, XD), lambda i: (i, 0)),        # x tile, double-buffered
            pl.BlockSpec((XD, H2), lambda i: (0, 0)),            # folded W1@W2, VMEM-resident
            pl.BlockSpec((H2, H3), lambda i: (0, 0)),            # W3, VMEM-resident
            pl.BlockSpec((8, H3), lambda i: (0, 0)),             # spectral-normed W4 rows
            pl.BlockSpec(memory_space=pltpu.MemorySpace.SMEM),   # bias scalar
        ],
        out_specs=pl.BlockSpec((1, tb_eff), lambda i: (i, 0)),   # lane-dense output row
        compiler_params=pltpu.CompilerParams(
            dimension_semantics=("parallel",),   # shards batch tiles across v7x's 2 TCs
            vmem_limit_bytes=40 * 1024 * 1024,   # ~23 MiB used at tb=8192 with f32 x
        ),
    )(x, w12, w3_b, w4_pad, b4_smem)

    # Rows >= B of the final ragged tile are garbage and sliced off here.
    return out.reshape(-1)[:B].reshape(B, 1)


def _reference_exact(x, w1, w2, w3, w4_raw, b4, u0):
    """Original module semantics, all f32, unfused."""
    hp = jax.lax.Precision.HIGHEST
    w4_sn, _ = _spectral_normalize(w4_raw, u0)
    h = jnp.dot(x, w1, precision=hp)
    h = jnp.dot(h, w2, precision=hp)
    h = jnp.where(h > 0, h, NEG_SLOPE * h)
    h = jnp.dot(h, w3, precision=hp)
    h = jnp.where(h > 0, h, NEG_SLOPE * h)
    return jnp.dot(h, w4_sn.T, precision=hp) + b4


def _reference_emulated(x, w1, w2, w3, w4_raw, b4, u0):
    """Same math as the kernel (folded W1@W2, bf16-rounded operands, f32 accumulation)."""
    hp = jax.lax.Precision.HIGHEST
    w4_sn, _ = _spectral_normalize(w4_raw, u0)
    w12 = (w1 @ w2).astype(jnp.bfloat16).astype(jnp.float32)
    xb = x.astype(jnp.bfloat16).astype(jnp.float32)
    h = jnp.dot(xb, w12, precision=hp)
    h = jnp.where(h > 0, h, NEG_SLOPE * h)
    h = jnp.dot(h.astype(jnp.bfloat16).astype(jnp.float32),
                w3.astype(jnp.bfloat16).astype(jnp.float32), precision=hp)
    h = jnp.where(h > 0, h, NEG_SLOPE * h)
    w4b = w4_sn.reshape(1, H3).astype(jnp.bfloat16).astype(jnp.float32)
    return jnp.sum(h.astype(jnp.bfloat16).astype(jnp.float32) * w4b,
                   axis=-1, keepdims=True) + b4


if __name__ == "__main__":
    key = jax.random.PRNGKey(0)
    k_x, k1, k2, k3, k4, kb, ku = jax.random.split(key, 7)

    B = 8
    x = jax.random.normal(k_x, (B, XD), dtype=jnp.float32)

    # Deterministic synthetic parameters (Kaiming-ish scaling), (in, out) layout.
    w1 = jax.random.normal(k1, (XD, H1), dtype=jnp.float32) * (1.0 / jnp.sqrt(XD))
    w2 = jax.random.normal(k2, (H1, H2), dtype=jnp.float32) * (1.0 / jnp.sqrt(H1))
    w3 = jax.random.normal(k3, (H2, H3), dtype=jnp.float32) * (1.0 / jnp.sqrt(H2))
    # Last layer kept in PyTorch (out, in) layout for spectral-norm math.
    w4_raw = jax.random.normal(k4, (1, H3), dtype=jnp.float32) * (1.0 / jnp.sqrt(H3))
    b4 = jax.random.normal(kb, (1,), dtype=jnp.float32) * 0.01
    u0 = jax.random.normal(ku, (1,), dtype=jnp.float32)
    u0 = u0 / jnp.maximum(jnp.linalg.norm(u0), 1e-12)

    out = discriminator_x(x, w1, w2, w3, w4_raw, b4, u0)
    out = jax.block_until_ready(out)
    assert out.shape == (B, 1), out.shape

    # Tight check vs same-precision math (kernel correctness).
    ref_emu = _reference_emulated(x, w1, w2, w3, w4_raw, b4, u0)
    assert jnp.allclose(out, ref_emu, atol=5e-3, rtol=5e-3), (out, ref_emu)

    # Loose check vs the exact f32 module semantics (bf16 MXU error budget).
    ref_f32 = _reference_exact(x, w1, w2, w3, w4_raw, b4, u0)
    assert jnp.allclose(out, ref_f32, atol=5e-2, rtol=5e-2), (out, ref_f32)

    print("KERNEL_OK")
</pallas_src>

<mosaic_0001>
module attributes {stable_mosaic.version = 11 : i64} {
  func.func @_disc_kernel(%arg0: i32, %arg1: memref<8x256xf32, #tpu.memory_space<vmem>>, %arg2: memref<256x32xbf16, #tpu.memory_space<vmem>>, %arg3: memref<32x16xbf16, #tpu.memory_space<vmem>>, %arg4: memref<8x16xbf16, #tpu.memory_space<vmem>>, %arg5: memref<1x1xf32, #tpu.memory_space<smem>>, %arg6: memref<1x8xf32, #tpu.memory_space<vmem>>) attributes {dimension_semantics = [#tpu.dimension_semantics<parallel>], iteration_bounds = array<i64: 1>, scalar_prefetch = 0 : i64, scratch_operands = 0 : i64, tpu.core_type = #tpu.core_type<tc>, window_params = [{transform_indices = @transform_0, window_bounds = array<i64: 8, 256>}, {pipeline_mode = #tpu.pipeline_mode<synchronous>, transform_indices = @transform_1, window_bounds = array<i64: 256, 32>}, {pipeline_mode = #tpu.pipeline_mode<synchronous>, transform_indices = @transform_2, window_bounds = array<i64: 32, 16>}, {pipeline_mode = #tpu.pipeline_mode<synchronous>, transform_indices = @transform_3, window_bounds = array<i64: 8, 16>}, {transform_indices = @transform_4, window_bounds = array<i64: 1, 1>}, {transform_indices = @transform_5, window_bounds = array<i64: 1, 8>}]} {
    %c0 = arith.constant 0 : index
    %c0_0 = arith.constant 0 : index
    %0 = vector.load %arg1[%c0, %c0_0] : memref<8x256xf32, #tpu.memory_space<vmem>>, vector<8x256xf32>
    %1 = arith.truncf %0 : vector<8x256xf32> to vector<8x256xbf16>
    %c0_1 = arith.constant 0 : index
    %c0_2 = arith.constant 0 : index
    %2 = vector.load %arg2[%c0_1, %c0_2] : memref<256x32xbf16, #tpu.memory_space<vmem>>, vector<256x32xbf16>
    %cst = arith.constant dense<0.000000e+00> : vector<8x32xf32>
    %3 = tpu.matmul %1, %2, %cst {dimension_numbers = #tpu.dot_dimension_numbers<[1], [0], [0], [1], [0, 0, 1, 1], [], []>} : vector<8x256xbf16>, vector<256x32xbf16>, vector<8x32xf32> -> vector<8x32xf32>
    %cst_3 = arith.constant 0.000000e+00 : f32
    %4 = vector.broadcast %cst_3 : f32 to vector<8x32xf32>
    %5 = arith.cmpf ogt, %3, %4 : vector<8x32xf32>
    %cst_4 = arith.constant 2.000000e-02 : f32
    %6 = vector.broadcast %cst_4 : f32 to vector<8x32xf32>
    %7 = arith.mulf %6, %3 : vector<8x32xf32>
    %8 = arith.select %5, %3, %7 : vector<8x32xi1>, vector<8x32xf32>
    %9 = arith.truncf %8 : vector<8x32xf32> to vector<8x32xbf16>
    %c0_5 = arith.constant 0 : index
    %c0_6 = arith.constant 0 : index
    %10 = vector.load %arg3[%c0_5, %c0_6] : memref<32x16xbf16, #tpu.memory_space<vmem>>, vector<32x16xbf16>
    %cst_7 = arith.constant dense<0.000000e+00> : vector<8x16xf32>
    %11 = tpu.matmul %9, %10, %cst_7 {dimension_numbers = #tpu.dot_dimension_numbers<[1], [0], [0], [1], [0, 0, 1, 1], [], []>} : vector<8x32xbf16>, vector<32x16xbf16>, vector<8x16xf32> -> vector<8x16xf32>
    %cst_8 = arith.constant 0.000000e+00 : f32
    %12 = vector.broadcast %cst_8 : f32 to vector<8x16xf32>
    %13 = arith.cmpf ogt, %11, %12 : vector<8x16xf32>
    %cst_9 = arith.constant 2.000000e-02 : f32
    %14 = vector.broadcast %cst_9 : f32 to vector<8x16xf32>
    %15 = arith.mulf %14, %11 : vector<8x16xf32>
    %16 = arith.select %13, %11, %15 : vector<8x16xi1>, vector<8x16xf32>
    %c0_10 = arith.constant 0 : index
    %c0_11 = arith.constant 0 : index
    %17 = vector.load %arg4[%c0_10, %c0_11] : memref<8x16xbf16, #tpu.memory_space<vmem>>, vector<8x16xbf16>
    %18 = arith.truncf %16 : vector<8x16xf32> to vector<8x16xbf16>
    %cst_12 = arith.constant dense<0.000000e+00> : vector<8x8xf32>
    %19 = tpu.matmul %17, %18, %cst_12 {dimension_numbers = #tpu.dot_dimension_numbers<[1], [1], [0], [0], [0, 0, 1, 0], [], []>} : vector<8x16xbf16>, vector<8x16xbf16>, vector<8x8xf32> -> vector<8x8xf32>
    %20 = vector.extract_strided_slice %19 {offsets = [0, 0], sizes = [1, 8], strides = [1, 1]} : vector<8x8xf32> to vector<1x8xf32>
    %c0_13 = arith.constant 0 : index
    %c0_14 = arith.constant 0 : index
    %21 = memref.load %arg5[%c0_13, %c0_14] : memref<1x1xf32, #tpu.memory_space<smem>>
    %22 = vector.broadcast %21 : f32 to vector<1x8xf32>
    %23 = arith.addf %20, %22 : vector<1x8xf32>
    %c0_15 = arith.constant 0 : index
    %c0_16 = arith.constant 0 : index
    %24 = vector.load %arg6[%c0_15, %c0_16] : memref<1x8xf32, #tpu.memory_space<vmem>>, vector<1x8xf32>
    tpu.vector_store %arg6[%c0_15, %c0_16], %23 {strides = array<i32>} : memref<1x8xf32, #tpu.memory_space<vmem>>, vector<1x8xf32>,
    return
  }
  func.func @transform_0(%arg0: i32) -> (i32, i32) {
    %c0_i32 = arith.constant 0 : i32
    %c0_i32_0 = arith.constant 0 : i32
    return %arg0, %c0_i32 : i32, i32
  }
  func.func @transform_1(%arg0: i32) -> (i32, i32) {
    %c0_i32 = arith.constant 0 : i32
    %c0_i32_0 = arith.constant 0 : i32
    %c0_i32_1 = arith.constant 0 : i32
    return %c0_i32, %c0_i32_0 : i32, i32
  }
  func.func @transform_2(%arg0: i32) -> (i32, i32) {
    %c0_i32 = arith.constant 0 : i32
    %c0_i32_0 = arith.constant 0 : i32
    %c0_i32_1 = arith.constant 0 : i32
    return %c0_i32, %c0_i32_0 : i32, i32
  }
  func.func @transform_3(%arg0: i32) -> (i32, i32) {
    %c0_i32 = arith.constant 0 : i32
    %c0_i32_0 = arith.constant 0 : i32
    %c0_i32_1 = arith.constant 0 : i32
    return %c0_i32, %c0_i32_0 : i32, i32
  }
  func.func @transform_4(%arg0: i32) -> (i32, i32) {
    %c0_i32 = arith.constant 0 : i32
    %c0_i32_0 = arith.constant 0 : i32
    %c0_i32_1 = arith.constant 0 : i32
    return %c0_i32, %c0_i32_0 : i32, i32
  }
  func.func @transform_5(%arg0: i32) -> (i32, i32) {
    %c0_i32 = arith.constant 0 : i32
    %c0_i32_0 = arith.constant 0 : i32
    return %arg0, %c0_i32 : i32, i32
  }
}

</mosaic_0001>

<llo_original>
// kernel: discriminator_x.1
$region0: #{discriminator_x.1}
  #allocation0 [shape = 'u32[]', space=smem, size = 0x4, offset = 0x4, fixed_abs, tag = 'smem constant byte address 0x4 - core index']
  #allocation1 [shape = 'u32[144,128]{1,0:T(1,128)}', space=vmem, size = 0x12000, scoped, tag = 'internal scratch']
  #allocation2 [shape = 'f32[1,1]{1,0:T(1,128)S(6)}', space=smem, size = 0x200, scoped, tag = 'scoped memory for discriminator_x.1']
  %s0 = inlined_call_operand.vmem [shape: f32[8,256], index: 0, kind: input, shape index: {}]
  %s1 = inlined_call_operand.vmem [shape: bf16[256,32], index: 1, kind: input, shape index: {}]
  %s2 = inlined_call_operand.vmem [shape: bf16[32,16], index: 2, kind: input, shape index: {}]
  %s3 = inlined_call_operand.vmem [shape: bf16[8,16], index: 3, kind: input, shape index: {}]
  %s4 = inlined_call_operand.<no memory space> [shape: f32[1,1], index: 4, kind: input, shape index: {}]
  %s5 = inlined_call_operand.hbm [shape: f32[1,8], index: 5, kind: output, shape index: {}]
  %s6 = sld [smem:[#allocation0]]
  $region30: #{discriminator_x.1} parent=0
    _
  %s8 = ssub.s32 1, %s6
  %s9 = scalar_select 0, %s8, %s6
  %10 = sst [smem:[#allocation2]] %s4
  $region1: #{discriminator_x.1} parent=0
    #allocation3 [shape = 'u8[512]{0}', space=vmem, size = 0x400, scoped, tag = 'output window, operand 0, single buffered']
    #allocation4 [shape = 's32[1]{0}', space=sflag, size = 0x4, scoped, tag = 'scoped memory for discriminator_x.1']
    %11 = vsyncpa [#allocation4], 0
    // Predicated region
    $region2: #{discriminator_x.1} parent=1 // pred_check
      _
    $region3: #{discriminator_x.1} parent=1 // pred_check_branch
      %13 = sbr.rel (0) target = $region5
    $region4: #{discriminator_x.1} parent=1 // pred_region
      _
    $region5: #{discriminator_x.1} parent=1 // pred_fallthru
      _
    // Predicated region
    $region6: #{discriminator_x.1} parent=1 // pred_check
      _
    $region7: #{discriminator_x.1} parent=1 // pred_check_branch
      %15 = sbr.rel (0) target = $region9
    $region8: #{discriminator_x.1} parent=1 // pred_region
      _
    $region9: #{discriminator_x.1} parent=1 // pred_fallthru
      _
    // Predicated region
    $region10: #{discriminator_x.1} parent=1 // pred_check
      _
    $region11: #{discriminator_x.1} parent=1 // pred_check_branch
      %17 = sbr.rel (0) target = $region13
    $region12: #{discriminator_x.1} parent=1 // pred_region
      _
    $region13: #{discriminator_x.1} parent=1 // pred_fallthru
      _
    // Predicated region
    $region14: #{discriminator_x.1} parent=1 // pred_check
      _
    $region15: #{discriminator_x.1} parent=1 // pred_check_branch
      %19 = sbr.rel (0) target = $region17
    $region16: #{discriminator_x.1} parent=1 // pred_region
      _
    $region17: #{discriminator_x.1} parent=1 // pred_fallthru
      _
    // Predicated region
    $region18: #{discriminator_x.1} parent=1 // pred_check
      _
    $region19: #{discriminator_x.1} parent=1 // pred_check_branch
      %21 = sbr.rel (0) target = $region21
    $region20: #{discriminator_x.1} parent=1 // pred_region
      _
    $region21: #{discriminator_x.1} parent=1 // pred_fallthru
      _
    %v23 = vld [vmem:[%s0] sm:$0xff]
    %v24 = vld [vmem:[%s0 + $0x8] sm:$0xff]
    %v25 = vpack.c.bf16 %v23, %v23
    %v26 = vpack.c.bf16 %v24, %v24
    %v27 = vld [vmem:[%s1] sm:$0xf]
    %v28 = vld [vmem:[%s1 + $0x4] sm:$0xf]
    %v29 = vld [vmem:[%s1 + $0x8] sm:$0xf]
    %v30 = vld [vmem:[%s1 + $0xc] sm:$0xf]
    %v31 = vld [vmem:[%s1 + $0x10] sm:$0xf]
    %v32 = vld [vmem:[%s1 + $0x14] sm:$0xf]
    %v33 = vld [vmem:[%s1 + $0x18] sm:$0xf]
    %v34 = vld [vmem:[%s1 + $0x1c] sm:$0xf]
    %v35 = vld [vmem:[%s1 + $0x20] sm:$0xf]
    %v36 = vld [vmem:[%s1 + $0x24] sm:$0xf]
    %v37 = vld [vmem:[%s1 + $0x28] sm:$0xf]
    %v38 = vld [vmem:[%s1 + $0x2c] sm:$0xf]
    %v39 = vld [vmem:[%s1 + $0x30] sm:$0xf]
    %v40 = vld [vmem:[%s1 + $0x34] sm:$0xf]
    %v41 = vld [vmem:[%s1 + $0x38] sm:$0xf]
    %v42 = vld [vmem:[%s1 + $0x3c] sm:$0xf]
    %v43 = vld [vmem:[%s1 + $0x40] sm:$0xf]
    %v44 = vld [vmem:[%s1 + $0x44] sm:$0xf]
    %v45 = vld [vmem:[%s1 + $0x48] sm:$0xf]
    %v46 = vld [vmem:[%s1 + $0x4c] sm:$0xf]
    %v47 = vld [vmem:[%s1 + $0x50] sm:$0xf]
    %v48 = vld [vmem:[%s1 + $0x54] sm:$0xf]
    %v49 = vld [vmem:[%s1 + $0x58] sm:$0xf]
    %v50 = vld [vmem:[%s1 + $0x5c] sm:$0xf]
    %v51 = vld [vmem:[%s1 + $0x60] sm:$0xf]
    %v52 = vld [vmem:[%s1 + $0x64] sm:$0xf]
    %v53 = vld [vmem:[%s1 + $0x68] sm:$0xf]
    %v54 = vld [vmem:[%s1 + $0x6c] sm:$0xf]
    %v55 = vld [vmem:[%s1 + $0x70] sm:$0xf]
    %v56 = vld [vmem:[%s1 + $0x74] sm:$0xf]
    %v57 = vld [vmem:[%s1 + $0x78] sm:$0xf]
    %v58 = vld [vmem:[%s1 + $0x7c] sm:$0xf]
    %v91 = vunpack.c.l.b16 %v27
    %v92 = vunpack.c.l.b16 %v28
    %v93 = vunpack.c.l.b16 %v29
    %v94 = vunpack.c.l.b16 %v30
    %v95 = vunpack.c.l.b16 %v31
    %v96 = vunpack.c.l.b16 %v32
    %v97 = vunpack.c.l.b16 %v33
    %v98 = vunpack.c.l.b16 %v34
    %v99 = vunpack.c.l.b16 %v35
    %v100 = vunpack.c.l.b16 %v36
    %v101 = vunpack.c.l.b16 %v37
    %v102 = vunpack.c.l.b16 %v38
    %v103 = vunpack.c.l.b16 %v39
    %v104 = vunpack.c.l.b16 %v40
    %v105 = vunpack.c.l.b16 %v41
    %v106 = vunpack.c.l.b16 %v42
    %v107 = vunpack.c.l.b16 %v43
    %v108 = vunpack.c.l.b16 %v44
    %v109 = vunpack.c.l.b16 %v45
    %v110 = vunpack.c.l.b16 %v46
    %v111 = vunpack.c.l.b16 %v47
    %v112 = vunpack.c.l.b16 %v48
    %v113 = vunpack.c.l.b16 %v49
    %v114 = vunpack.c.l.b16 %v50
    %v115 = vunpack.c.l.b16 %v51
    %v116 = vunpack.c.l.b16 %v52
    %v117 = vunpack.c.l.b16 %v53
    %v118 = vunpack.c.l.b16 %v54
    %v119 = vunpack.c.l.b16 %v55
    %v120 = vunpack.c.l.b16 %v56
    %v121 = vunpack.c.l.b16 %v57
    %v122 = vunpack.c.l.b16 %v58
    %v123 = vpack.c.b16 %v92, %v91
    %v124 = vpack.c.b16 %v94, %v93
    %v125 = vpack.c.b16 %v96, %v95
    %v126 = vpack.c.b16 %v98, %v97
    %v127 = vpack.c.b16 %v100, %v99
    %v128 = vpack.c.b16 %v102, %v101
    %v129 = vpack.c.b16 %v104, %v103
    %v130 = vpack.c.b16 %v106, %v105
    %v131 = vpack.c.b16 %v108, %v107
    %v132 = vpack.c.b16 %v110, %v109
    %v133 = vpack.c.b16 %v112, %v111
    %v134 = vpack.c.b16 %v114, %v113
    %v135 = vpack.c.b16 %v116, %v115
    %v136 = vpack.c.b16 %v118, %v117
    %v137 = vpack.c.b16 %v120, %v119
    %v138 = vpack.c.b16 %v122, %v121
    %155 = vmatprep.subr.bf16.mxu0 0
    %156 = vmatpush1.bf16.msra.mxu0 %v130
    %157 = vmatprep.subr.bf16.mxu0 0
    %158 = vmatpush1.bf16.msra.mxu0 %v129
    %159 = vmatprep.subr.bf16.mxu0 0
    %160 = vmatpush1.bf16.msra.mxu0 %v128
    %161 = vmatprep.subr.bf16.mxu0 0
    %162 = vmatpush1.bf16.msra.mxu0 %v127
    %163 = vmatprep.subr.bf16.mxu0 0
    %164 = vmatpush1.bf16.msra.mxu0 %v126
    %165 = vmatprep.subr.bf16.mxu0 0
    %166 = vmatpush1.bf16.msra.mxu0 %v125
    %167 = vmatprep.subr.bf16.mxu0 0
    %168 = vmatpush1.bf16.msra.mxu0 %v124
    %169 = vmatprep.subr.bf16.mxu0 0
    %170 = vmatpush1.bf16.msra.mxu0 %v123
    %171 = vmatprep.subr.bf16.mxu0 0
    %172 = vmatpush2.bf16.msra.mxu0 %v138
    %173 = vmatprep.subr.bf16.mxu0 0
    %174 = vmatpush2.bf16.msra.mxu0 %v137
    %175 = vmatprep.subr.bf16.mxu0 0
    %176 = vmatpush2.bf16.msra.mxu0 %v136
    %177 = vmatprep.subr.bf16.mxu0 0
    %178 = vmatpush2.bf16.msra.mxu0 %v135
    %179 = vmatprep.subr.bf16.mxu0 0
    %180 = vmatpush2.bf16.msra.mxu0 %v134
    %181 = vmatprep.subr.bf16.mxu0 0
    %182 = vmatpush2.bf16.msra.mxu0 %v133
    %183 = vmatprep.subr.bf16.mxu0 0
    %184 = vmatpush2.bf16.msra.mxu0 %v132
    %185 = vmatprep.subr.bf16.mxu0 0
    %186 = vmatpush2.bf16.msra.mxu0 %v131
    %187 = vmatprep.mubr.bf16.mxu0 %v26
    %188 = vmatmul.mubr.bf16.gmra.mxu0 %v25
    %v189 = vpop.f32.mrf.mxu0
    %v190 = vadd.f32 0.0, %v189
    %v191 = vpop.f32.mrf.mxu0
    %v192 = vpop.f32.mrf.mxu0
    %v193 = vpop.f32.mrf.mxu0
    %194 = vdwg.mxu0
    %vm195 = vcmp.gt.f32.partialorder %v190, 0.0
    %v196 = vmul.f32 %v190, 0.02
    %v197 = vsel %vm195, %v190, %v196
    %v198 = vpack.c.bf16 %v197, %v197
    %v199 = vld [vmem:[%s2] sm:$0xf]
    %v200 = vld [vmem:[%s2 + $0x4] sm:$0xf]
    %v201 = vld [vmem:[%s2 + $0x8] sm:$0xf]
    %v202 = vld [vmem:[%s2 + $0xc] sm:$0xf]
    %v207 = vunpack.c.l.b16 %v199
    %v208 = vunpack.c.l.b16 %v200
    %v209 = vunpack.c.l.b16 %v201
    %v210 = vunpack.c.l.b16 %v202
    %v211 = vpack.c.b16 %v208, %v207
    %v212 = vpack.c.b16 %v210, %v209
    %vm215 = vcmask 261120
    %v217 = vsel %vm215, %v198, 0
    %219 = vmatprep.subr.bf16.mxu0 0
    %220 = vmatpush1.bf16.msra.mxu0 0
    %221 = vmatprep.subr.bf16.mxu0 0
    %222 = vmatpush1.bf16.msra.mxu0 0
    %223 = vmatprep.subr.bf16.mxu0 0
    %224 = vmatpush1.bf16.msra.mxu0 0
    %225 = vmatprep.subr.bf16.mxu0 0
    %226 = vmatpush1.bf16.msra.mxu0 0
    %227 = vmatprep.subr.bf16.mxu0 0
    %228 = vmatpush1.bf16.msra.mxu0 0
    %229 = vmatprep.subr.bf16.mxu0 0
    %230 = vmatpush1.bf16.msra.mxu0 0
    %231 = vmatprep.subr.bf16.mxu0 0
    %232 = vmatpush1.bf16.msra.mxu0 %v212
    %233 = vmatprep.subr.bf16.mxu0 0
    %234 = vmatpush1.bf16.msra.mxu0 %v211
    %235 = vmatprep.subr.bf16.mxu0 0
    %236 = vmatpush2.bf16.msra.mxu0 0
    %237 = vmatprep.subr.bf16.mxu0 0
    %238 = vmatpush2.bf16.msra.mxu0 0
    %239 = vmatprep.subr.bf16.mxu0 0
    %240 = vmatpush2.bf16.msra.mxu0 0
    %241 = vmatprep.subr.bf16.mxu0 0
    %242 = vmatpush2.bf16.msra.mxu0 0
    %243 = vmatprep.subr.bf16.mxu0 0
    %244 = vmatpush2.bf16.msra.mxu0 0
    %245 = vmatprep.subr.bf16.mxu0 0
    %246 = vmatpush2.bf16.msra.mxu0 0
    %247 = vmatprep.subr.bf16.mxu0 0
    %248 = vmatpush2.bf16.msra.mxu0 0
    %249 = vmatprep.subr.bf16.mxu0 0
    %250 = vmatpush2.bf16.msra.mxu0 0
    %251 = vmatprep.mubr.bf16.mxu0 0
    %252 = vmatmul.mubr.bf16.gmra.mxu0 %v217
    %v253 = vpop.f32.mrf.mxu0
    %v254 = vadd.f32 0.0, %v253
    %v255 = vpop.f32.mrf.mxu0
    %v256 = vpop.f32.mrf.mxu0
    %v257 = vpop.f32.mrf.mxu0
    %258 = vdwg.mxu0
    %vm259 = vcmp.gt.f32.partialorder %v254, 0.0
    %v260 = vmul.f32 %v254, 0.02
    %v261 = vsel %vm259, %v254, %v260
    %v262 = vld [vmem:[%s3] sm:$0xf]
    %v263 = vpack.c.bf16 %v261, %v261
    %vm264 = vcmask 130048
    %v266 = vsel %vm264, %v262, 0
    %v269 = vsel %vm264, %v263, 0
    %271 = vmatprep.subr.bf16.mxu0 0
    %272 = vmatpush1.bf16.xpose.msra.mxu0 0
    %273 = vmatprep.subr.bf16.mxu0 0
    %274 = vmatpush1.bf16.xpose.msra.mxu0 0
    %275 = vmatprep.subr.bf16.mxu0 0
    %276 = vmatpush1.bf16.xpose.msra.mxu0 0
    %277 = vmatprep.subr.bf16.mxu0 0
    %278 = vmatpush1.bf16.xpose.msra.mxu0 0
    %279 = vmatprep.subr.bf16.mxu0 0
    %280 = vmatpush1.bf16.xpose.msra.mxu0 0
    %281 = vmatprep.subr.bf16.mxu0 0
    %282 = vmatpush1.bf16.xpose.msra.mxu0 0
    %283 = vmatprep.subr.bf16.mxu0 0
    %284 = vmatpush1.bf16.xpose.msra.mxu0 0
    %285 = vmatprep.subr.bf16.mxu0 0
    %286 = vmatpush1.bf16.xpose.msra.mxu0 %v269
    %287 = vmatprep.subr.bf16.mxu0 0
    %288 = vmatpush2.bf16.xpose.msra.mxu0 0
    %289 = vmatprep.subr.bf16.mxu0 0
    %290 = vmatpush2.bf16.xpose.msra.mxu0 0
    %291 = vmatprep.subr.bf16.mxu0 0
    %292 = vmatpush2.bf16.xpose.msra.mxu0 0
    %293 = vmatprep.subr.bf16.mxu0 0
    %294 = vmatpush2.bf16.xpose.msra.mxu0 0
    %295 = vmatprep.subr.bf16.mxu0 0
    %296 = vmatpush2.bf16.xpose.msra.mxu0 0
    %297 = vmatprep.subr.bf16.mxu0 0
    %298 = vmatpush2.bf16.xpose.msra.mxu0 0
    %299 = vmatprep.subr.bf16.mxu0 0
    %300 = vmatpush2.bf16.xpose.msra.mxu0 0
    %301 = vmatprep.subr.bf16.mxu0 0
    %302 = vmatpush2.bf16.xpose.msra.mxu0 0
    %303 = vmatprep.mubr.bf16.mxu0 0
    %304 = vmatmul.mubr.bf16.gmra.mxu0 %v266
    %v305 = vpop.f32.mrf.mxu0
    %v306 = vadd.f32 0.0, %v305
    %v307 = vpop.f32.mrf.mxu0
    %v308 = vpop.f32.mrf.mxu0
    %v309 = vpop.f32.mrf.mxu0
    %310 = vdwg.mxu0
    %s311 = sld [smem:[#allocation2]]
    %v312 = vstv %s311
    %v313 = vadd.f32 %v306, %v312
    %vm314 = vcmask 57344
    %315 = vst.msk [vmem:[#allocation3] sm:$0x1] %vm314, %v313
    // Predicated region
    $region22: #{discriminator_x.1} parent=1 // pred_check
      _
    $region23: #{discriminator_x.1} parent=1 // pred_check_branch
      %317 = sbr.rel (0) target = $region25
    $region24: #{discriminator_x.1} parent=1 // pred_region
      %s319 = ssub.s32 16, 16
      %320 = vsyncadd [#allocation4], %s319
      %s322 = sshll.u32 [#allocation3], 4
      %s323 = int_to_ptr.vmem [resolvable:$true] %s322
      %325 = dma.vmem_to_hbm [thread:$0]  %s323, 16, %s5, [#allocation4]
    $region25: #{discriminator_x.1} parent=1 // pred_fallthru
      _
    // Predicated region
    $region26: #{discriminator_x.1} parent=1 // pred_check
      _
    $region27: #{discriminator_x.1} parent=1 // pred_check_branch
      %327 = sbr.rel (0) target = $region29
    $region28: #{discriminator_x.1} parent=1 // pred_region
      %328 = dma.done [#allocation4], 16
    $region29: #{discriminator_x.1} parent=1 // pred_fallthru
      _
    %329 = vsyncpa [#allocation4], 1

</llo_original>
